<compile_context>
chip_gen: v7x
topology: tpu7x:2x2x1
jax: 0.10.0
libtpu: 0.0.40
codegen_flags: <defaults>
</compile_context>

<pallas_src>
import functools

import jax
import jax.numpy as jnp
from jax import lax
from jax.experimental import pallas as pl
from jax.experimental.pallas import tpu as pltpu


def _dsnn_kernel(x_ref, *refs, n_layers, sim_time, alpha, beta, threshold,
                 reset_potential):
    """Whole SNN simulation in one kernel invocation.

    refs = (w_0, ..., w_{L-1}, out).  All state lives in vregs (fori_loop
    carry); no VMEM scratch.
    """
    w_refs = refs[:n_layers]
    out_ref = refs[n_layers]

    batch = x_ref.shape[0]
    dims = [w_refs[l].shape[1] for l in range(n_layers)]

    # Load weights once (tiny; resident in VMEM anyway).
    ws = [w_refs[l][...] for l in range(n_layers)]

    # Hoisted, time-invariant layer-0 synaptic drive: one MXU pass total.
    h0 = jnp.dot(x_ref[...], ws[0], preferred_element_type=jnp.float32)

    # Carry: mem for every layer; syn only for the middle layers (layer 0 and
    # the last layer never read their syn state -- new_syn = h).
    mem0 = tuple(jnp.zeros((batch, dims[l]), jnp.float32)
                 for l in range(n_layers))
    syn0 = tuple(jnp.zeros((batch, dims[l]), jnp.float32)
                 for l in range(1, n_layers - 1))

    def step(t, carry):
        del t
        mem, syn = carry
        new_mem = list(mem)
        new_syn = list(syn)
        spk_prev = None
        for l in range(n_layers):
            if l == 0:
                nsyn = h0                                   # 0*syn + x @ W0
            else:
                h = jnp.dot(spk_prev, ws[l],
                            preferred_element_type=jnp.float32)
                if l == n_layers - 1:
                    nsyn = h                                # 0*syn + h
                else:
                    nsyn = alpha * syn[l - 1] + h
                    new_syn[l - 1] = nsyn

            if l == n_layers - 1:
                nmem = mem[l] + nsyn                        # 1*mem + syn
            else:
                nmem = beta * mem[l] + nsyn

            if l < n_layers - 1:
                mthr = nmem - threshold
                cond = mthr > 0.0
                spk_prev = cond.astype(jnp.float32)         # spike_fn forward
                nmem = jnp.where(cond, jnp.float32(reset_potential), nmem)

            new_mem[l] = nmem
        return (tuple(new_mem), tuple(new_syn))

    # t == 0 in the PyTorch forward only records zeros and `continue`s, so the
    # simulated loop runs over t = 1 .. sim_time-1.  sim_time is small and
    # static -> fully unroll for LLO scheduler visibility.
    if sim_time > 1:
        mem_final, _ = lax.fori_loop(1, sim_time, step, (mem0, syn0),
                                     unroll=True)
    else:
        mem_final = mem0

    # TD3 actor head: tanh of the final layer's membrane at the last timestep.
    out_ref[...] = jnp.tanh(mem_final[n_layers - 1])


def td3_actor_dsnn_forward(x, weights, *, alpha, beta, threshold,
                           simulation_time, reset_potential=0.0):
    """Pallas wrapper. Returns tanh(mem_rec[-1][-1]) (the actor's action)."""
    batch = x.shape[0]
    n_layers = len(weights)
    out_dim = weights[-1].shape[1]

    kernel = functools.partial(
        _dsnn_kernel,
        n_layers=n_layers,
        sim_time=int(simulation_time),
        alpha=float(alpha),
        beta=float(beta),
        threshold=float(threshold),
        reset_potential=float(reset_potential),
    )

    vmem_spec = pl.BlockSpec(memory_space=pltpu.MemorySpace.VMEM)

    return pl.pallas_call(
        kernel,
        out_shape=jax.ShapeDtypeStruct((batch, out_dim), jnp.float32),
        in_specs=[vmem_spec] * (1 + n_layers),
        out_specs=vmem_spec,
    )(x, *weights)


def td3_actor_dsnn_reference(x, weights, *, alpha, beta, threshold,
                             simulation_time, reset_potential=0.0):
    """Pure-JAX reference mirroring TD3ActorDSNN.forward (random_params=False)."""
    batch = x.shape[0]
    n_layers = len(weights)
    syn = [jnp.zeros((batch, w.shape[1]), jnp.float32) for w in weights]
    mem = [jnp.zeros((batch, w.shape[1]), jnp.float32) for w in weights]
    for t in range(simulation_time):
        if t == 0:
            continue
        spk_prev = None
        for l in range(n_layers):
            if l == 0:
                h = x @ weights[0]
                new_syn = h
            elif l == n_layers - 1:
                h = spk_prev @ weights[l]
                new_syn = h
            else:
                h = spk_prev @ weights[l]
                new_syn = alpha * syn[l] + h
            if l == n_layers - 1:
                new_mem = mem[l] + new_syn
            else:
                new_mem = beta * mem[l] + new_syn
            if l < n_layers - 1:
                mthr = new_mem - threshold
                cond = mthr > 0.0
                spk_prev = cond.astype(jnp.float32)
                new_mem = jnp.where(cond, jnp.float32(reset_potential), new_mem)
            mem[l] = new_mem
            syn[l] = new_syn
    return jnp.tanh(mem[-1])


if __name__ == "__main__":
    # Small, module-consistent shapes: 4 observations -> 32 -> 32 -> 2 actions.
    architecture = [4, 32, 32, 2]
    batch_size = 2
    alpha = 0.5
    beta = 0.5
    threshold = 0.1
    simulation_time = 5
    weight_scale = 1.0
    reset_potential = 0.0

    key = jax.random.PRNGKey(0)
    key, xkey = jax.random.split(key)
    x = jax.random.normal(xkey, (batch_size, architecture[0]), dtype=jnp.float32)

    # Deterministic weight init: N(0, weight_scale / sqrt(fan_in)), as in __init__.
    weights = []
    for i in range(len(architecture) - 1):
        key, wkey = jax.random.split(key)
        std = weight_scale / jnp.sqrt(jnp.float32(architecture[i]))
        weights.append(
            std * jax.random.normal(
                wkey, (architecture[i], architecture[i + 1]), dtype=jnp.float32))

    out = td3_actor_dsnn_forward(
        x, weights, alpha=alpha, beta=beta, threshold=threshold,
        simulation_time=simulation_time, reset_potential=reset_potential)
    out = jax.block_until_ready(out)

    ref = td3_actor_dsnn_reference(
        x, weights, alpha=alpha, beta=beta, threshold=threshold,
        simulation_time=simulation_time, reset_potential=reset_potential)
    ref = jax.block_until_ready(ref)

    assert out.shape == (batch_size, architecture[-1])
    assert jnp.allclose(out, ref, rtol=1e-5, atol=1e-5), (out, ref)

    print("KERNEL_OK")
</pallas_src>

<mosaic_0001>
module attributes {stable_mosaic.version = 11 : i64} {
  func.func @_dsnn_kernel(%arg0: memref<2x4xf32, #tpu.memory_space<vmem>>, %arg1: memref<4x32xf32, #tpu.memory_space<vmem>>, %arg2: memref<32x32xf32, #tpu.memory_space<vmem>>, %arg3: memref<32x2xf32, #tpu.memory_space<vmem>>, %arg4: memref<2x2xf32, #tpu.memory_space<vmem>>) attributes {dimension_semantics = [], scalar_prefetch = 0 : i64, scratch_operands = 0 : i64, tpu.core_type = #tpu.core_type<tc>} {
    %c0 = arith.constant 0 : index
    %c0_0 = arith.constant 0 : index
    %0 = vector.load %arg1[%c0, %c0_0] : memref<4x32xf32, #tpu.memory_space<vmem>>, vector<4x32xf32>
    %c0_1 = arith.constant 0 : index
    %c0_2 = arith.constant 0 : index
    %1 = vector.load %arg2[%c0_1, %c0_2] : memref<32x32xf32, #tpu.memory_space<vmem>>, vector<32x32xf32>
    %c0_3 = arith.constant 0 : index
    %c0_4 = arith.constant 0 : index
    %2 = vector.load %arg3[%c0_3, %c0_4] : memref<32x2xf32, #tpu.memory_space<vmem>>, vector<32x2xf32>
    %c0_5 = arith.constant 0 : index
    %c0_6 = arith.constant 0 : index
    %3 = vector.load %arg0[%c0_5, %c0_6] : memref<2x4xf32, #tpu.memory_space<vmem>>, vector<2x4xf32>
    %cst = arith.constant dense<0.000000e+00> : vector<2x32xf32>
    %4 = tpu.matmul %3, %0, %cst {dimension_numbers = #tpu.dot_dimension_numbers<[1], [0], [0], [1], [0, 0, 1, 1], [], []>} : vector<2x4xf32>, vector<4x32xf32>, vector<2x32xf32> -> vector<2x32xf32>
    %cst_7 = arith.constant 0.000000e+00 : f32
    %5 = vector.broadcast %cst_7 : f32 to vector<2x32xf32>
    %cst_8 = arith.constant 0.000000e+00 : f32
    %6 = vector.broadcast %cst_8 : f32 to vector<2x32xf32>
    %cst_9 = arith.constant 0.000000e+00 : f32
    %7 = vector.broadcast %cst_9 : f32 to vector<2x2xf32>
    %cst_10 = arith.constant 0.000000e+00 : f32
    %8 = vector.broadcast %cst_10 : f32 to vector<2x32xf32>
    %c0_i32 = arith.constant 0 : i32
    %cst_11 = arith.constant 5.000000e-01 : f32
    %9 = vector.broadcast %cst_11 : f32 to vector<2x32xf32>
    %10 = arith.mulf %9, %5 : vector<2x32xf32>
    %11 = arith.addf %10, %4 : vector<2x32xf32>
    %cst_12 = arith.constant 1.000000e-01 : f32
    %12 = vector.broadcast %cst_12 : f32 to vector<2x32xf32>
    %13 = arith.subf %11, %12 : vector<2x32xf32>
    %cst_13 = arith.constant 0.000000e+00 : f32
    %14 = vector.broadcast %cst_13 : f32 to vector<2x32xf32>
    %15 = arith.cmpf ogt, %13, %14 : vector<2x32xf32>
    %16 = arith.extui %15 : vector<2x32xi1> to vector<2x32xi32>
    %17 = arith.sitofp %16 : vector<2x32xi32> to vector<2x32xf32>
    %cst_14 = arith.constant 0.000000e+00 : f32
    %18 = vector.broadcast %cst_14 : f32 to vector<2x32xf32>
    %19 = arith.select %15, %18, %11 : vector<2x32xi1>, vector<2x32xf32>
    %cst_15 = arith.constant dense<0.000000e+00> : vector<2x32xf32>
    %20 = tpu.matmul %17, %1, %cst_15 {dimension_numbers = #tpu.dot_dimension_numbers<[1], [0], [0], [1], [0, 0, 1, 1], [], []>} : vector<2x32xf32>, vector<32x32xf32>, vector<2x32xf32> -> vector<2x32xf32>
    %cst_16 = arith.constant 5.000000e-01 : f32
    %21 = vector.broadcast %cst_16 : f32 to vector<2x32xf32>
    %22 = arith.mulf %21, %8 : vector<2x32xf32>
    %23 = arith.addf %22, %20 : vector<2x32xf32>
    %cst_17 = arith.constant 5.000000e-01 : f32
    %24 = vector.broadcast %cst_17 : f32 to vector<2x32xf32>
    %25 = arith.mulf %24, %6 : vector<2x32xf32>
    %26 = arith.addf %25, %23 : vector<2x32xf32>
    %cst_18 = arith.constant 1.000000e-01 : f32
    %27 = vector.broadcast %cst_18 : f32 to vector<2x32xf32>
    %28 = arith.subf %26, %27 : vector<2x32xf32>
    %cst_19 = arith.constant 0.000000e+00 : f32
    %29 = vector.broadcast %cst_19 : f32 to vector<2x32xf32>
    %30 = arith.cmpf ogt, %28, %29 : vector<2x32xf32>
    %31 = arith.extui %30 : vector<2x32xi1> to vector<2x32xi32>
    %32 = arith.sitofp %31 : vector<2x32xi32> to vector<2x32xf32>
    %cst_20 = arith.constant 0.000000e+00 : f32
    %33 = vector.broadcast %cst_20 : f32 to vector<2x32xf32>
    %34 = arith.select %30, %33, %26 : vector<2x32xi1>, vector<2x32xf32>
    %cst_21 = arith.constant dense<0.000000e+00> : vector<2x2xf32>
    %35 = tpu.matmul %32, %2, %cst_21 {dimension_numbers = #tpu.dot_dimension_numbers<[1], [0], [0], [1], [0, 0, 1, 1], [], []>} : vector<2x32xf32>, vector<32x2xf32>, vector<2x2xf32> -> vector<2x2xf32>
    %36 = arith.addf %7, %35 : vector<2x2xf32>
    %c1_i32 = arith.constant 1 : i32
    %cst_22 = arith.constant 5.000000e-01 : f32
    %37 = vector.broadcast %cst_22 : f32 to vector<2x32xf32>
    %38 = arith.mulf %37, %19 : vector<2x32xf32>
    %39 = arith.addf %38, %4 : vector<2x32xf32>
    %cst_23 = arith.constant 1.000000e-01 : f32
    %40 = vector.broadcast %cst_23 : f32 to vector<2x32xf32>
    %41 = arith.subf %39, %40 : vector<2x32xf32>
    %cst_24 = arith.constant 0.000000e+00 : f32
    %42 = vector.broadcast %cst_24 : f32 to vector<2x32xf32>
    %43 = arith.cmpf ogt, %41, %42 : vector<2x32xf32>
    %44 = arith.extui %43 : vector<2x32xi1> to vector<2x32xi32>
    %45 = arith.sitofp %44 : vector<2x32xi32> to vector<2x32xf32>
    %cst_25 = arith.constant 0.000000e+00 : f32
    %46 = vector.broadcast %cst_25 : f32 to vector<2x32xf32>
    %47 = arith.select %43, %46, %39 : vector<2x32xi1>, vector<2x32xf32>
    %cst_26 = arith.constant dense<0.000000e+00> : vector<2x32xf32>
    %48 = tpu.matmul %45, %1, %cst_26 {dimension_numbers = #tpu.dot_dimension_numbers<[1], [0], [0], [1], [0, 0, 1, 1], [], []>} : vector<2x32xf32>, vector<32x32xf32>, vector<2x32xf32> -> vector<2x32xf32>
    %cst_27 = arith.constant 5.000000e-01 : f32
    %49 = vector.broadcast %cst_27 : f32 to vector<2x32xf32>
    %50 = arith.mulf %49, %23 : vector<2x32xf32>
    %51 = arith.addf %50, %48 : vector<2x32xf32>
    %cst_28 = arith.constant 5.000000e-01 : f32
    %52 = vector.broadcast %cst_28 : f32 to vector<2x32xf32>
    %53 = arith.mulf %52, %34 : vector<2x32xf32>
    %54 = arith.addf %53, %51 : vector<2x32xf32>
    %cst_29 = arith.constant 1.000000e-01 : f32
    %55 = vector.broadcast %cst_29 : f32 to vector<2x32xf32>
    %56 = arith.subf %54, %55 : vector<2x32xf32>
    %cst_30 = arith.constant 0.000000e+00 : f32
    %57 = vector.broadcast %cst_30 : f32 to vector<2x32xf32>
    %58 = arith.cmpf ogt, %56, %57 : vector<2x32xf32>
    %59 = arith.extui %58 : vector<2x32xi1> to vector<2x32xi32>
    %60 = arith.sitofp %59 : vector<2x32xi32> to vector<2x32xf32>
    %cst_31 = arith.constant 0.000000e+00 : f32
    %61 = vector.broadcast %cst_31 : f32 to vector<2x32xf32>
    %62 = arith.select %58, %61, %54 : vector<2x32xi1>, vector<2x32xf32>
    %cst_32 = arith.constant dense<0.000000e+00> : vector<2x2xf32>
    %63 = tpu.matmul %60, %2, %cst_32 {dimension_numbers = #tpu.dot_dimension_numbers<[1], [0], [0], [1], [0, 0, 1, 1], [], []>} : vector<2x32xf32>, vector<32x2xf32>, vector<2x2xf32> -> vector<2x2xf32>
    %64 = arith.addf %36, %63 : vector<2x2xf32>
    %c2_i32 = arith.constant 2 : i32
    %cst_33 = arith.constant 5.000000e-01 : f32
    %65 = vector.broadcast %cst_33 : f32 to vector<2x32xf32>
    %66 = arith.mulf %65, %47 : vector<2x32xf32>
    %67 = arith.addf %66, %4 : vector<2x32xf32>
    %cst_34 = arith.constant 1.000000e-01 : f32
    %68 = vector.broadcast %cst_34 : f32 to vector<2x32xf32>
    %69 = arith.subf %67, %68 : vector<2x32xf32>
    %cst_35 = arith.constant 0.000000e+00 : f32
    %70 = vector.broadcast %cst_35 : f32 to vector<2x32xf32>
    %71 = arith.cmpf ogt, %69, %70 : vector<2x32xf32>
    %72 = arith.extui %71 : vector<2x32xi1> to vector<2x32xi32>
    %73 = arith.sitofp %72 : vector<2x32xi32> to vector<2x32xf32>
    %cst_36 = arith.constant 0.000000e+00 : f32
    %74 = vector.broadcast %cst_36 : f32 to vector<2x32xf32>
    %75 = arith.select %71, %74, %67 : vector<2x32xi1>, vector<2x32xf32>
    %cst_37 = arith.constant dense<0.000000e+00> : vector<2x32xf32>
    %76 = tpu.matmul %73, %1, %cst_37 {dimension_numbers = #tpu.dot_dimension_numbers<[1], [0], [0], [1], [0, 0, 1, 1], [], []>} : vector<2x32xf32>, vector<32x32xf32>, vector<2x32xf32> -> vector<2x32xf32>
    %cst_38 = arith.constant 5.000000e-01 : f32
    %77 = vector.broadcast %cst_38 : f32 to vector<2x32xf32>
    %78 = arith.mulf %77, %51 : vector<2x32xf32>
    %79 = arith.addf %78, %76 : vector<2x32xf32>
    %cst_39 = arith.constant 5.000000e-01 : f32
    %80 = vector.broadcast %cst_39 : f32 to vector<2x32xf32>
    %81 = arith.mulf %80, %62 : vector<2x32xf32>
    %82 = arith.addf %81, %79 : vector<2x32xf32>
    %cst_40 = arith.constant 1.000000e-01 : f32
    %83 = vector.broadcast %cst_40 : f32 to vector<2x32xf32>
    %84 = arith.subf %82, %83 : vector<2x32xf32>
    %cst_41 = arith.constant 0.000000e+00 : f32
    %85 = vector.broadcast %cst_41 : f32 to vector<2x32xf32>
    %86 = arith.cmpf ogt, %84, %85 : vector<2x32xf32>
    %87 = arith.extui %86 : vector<2x32xi1> to vector<2x32xi32>
    %88 = arith.sitofp %87 : vector<2x32xi32> to vector<2x32xf32>
    %cst_42 = arith.constant 0.000000e+00 : f32
    %89 = vector.broadcast %cst_42 : f32 to vector<2x32xf32>
    %90 = arith.select %86, %89, %82 : vector<2x32xi1>, vector<2x32xf32>
    %cst_43 = arith.constant dense<0.000000e+00> : vector<2x2xf32>
    %91 = tpu.matmul %88, %2, %cst_43 {dimension_numbers = #tpu.dot_dimension_numbers<[1], [0], [0], [1], [0, 0, 1, 1], [], []>} : vector<2x32xf32>, vector<32x2xf32>, vector<2x2xf32> -> vector<2x2xf32>
    %92 = arith.addf %64, %91 : vector<2x2xf32>
    %c3_i32 = arith.constant 3 : i32
    %cst_44 = arith.constant 5.000000e-01 : f32
    %93 = vector.broadcast %cst_44 : f32 to vector<2x32xf32>
    %94 = arith.mulf %93, %75 : vector<2x32xf32>
    %95 = arith.addf %94, %4 : vector<2x32xf32>
    %cst_45 = arith.constant 1.000000e-01 : f32
    %96 = vector.broadcast %cst_45 : f32 to vector<2x32xf32>
    %97 = arith.subf %95, %96 : vector<2x32xf32>
    %cst_46 = arith.constant 0.000000e+00 : f32
    %98 = vector.broadcast %cst_46 : f32 to vector<2x32xf32>
    %99 = arith.cmpf ogt, %97, %98 : vector<2x32xf32>
    %100 = arith.extui %99 : vector<2x32xi1> to vector<2x32xi32>
    %101 = arith.sitofp %100 : vector<2x32xi32> to vector<2x32xf32>
    %cst_47 = arith.constant 0.000000e+00 : f32
    %102 = vector.broadcast %cst_47 : f32 to vector<2x32xf32>
    %103 = arith.select %99, %102, %95 : vector<2x32xi1>, vector<2x32xf32>
    %cst_48 = arith.constant dense<0.000000e+00> : vector<2x32xf32>
    %104 = tpu.matmul %101, %1, %cst_48 {dimension_numbers = #tpu.dot_dimension_numbers<[1], [0], [0], [1], [0, 0, 1, 1], [], []>} : vector<2x32xf32>, vector<32x32xf32>, vector<2x32xf32> -> vector<2x32xf32>
    %cst_49 = arith.constant 5.000000e-01 : f32
    %105 = vector.broadcast %cst_49 : f32 to vector<2x32xf32>
    %106 = arith.mulf %105, %79 : vector<2x32xf32>
    %107 = arith.addf %106, %104 : vector<2x32xf32>
    %cst_50 = arith.constant 5.000000e-01 : f32
    %108 = vector.broadcast %cst_50 : f32 to vector<2x32xf32>
    %109 = arith.mulf %108, %90 : vector<2x32xf32>
    %110 = arith.addf %109, %107 : vector<2x32xf32>
    %cst_51 = arith.constant 1.000000e-01 : f32
    %111 = vector.broadcast %cst_51 : f32 to vector<2x32xf32>
    %112 = arith.subf %110, %111 : vector<2x32xf32>
    %cst_52 = arith.constant 0.000000e+00 : f32
    %113 = vector.broadcast %cst_52 : f32 to vector<2x32xf32>
    %114 = arith.cmpf ogt, %112, %113 : vector<2x32xf32>
    %115 = arith.extui %114 : vector<2x32xi1> to vector<2x32xi32>
    %116 = arith.sitofp %115 : vector<2x32xi32> to vector<2x32xf32>
    %cst_53 = arith.constant 0.000000e+00 : f32
    %117 = vector.broadcast %cst_53 : f32 to vector<2x32xf32>
    %118 = arith.select %114, %117, %110 : vector<2x32xi1>, vector<2x32xf32>
    %cst_54 = arith.constant dense<0.000000e+00> : vector<2x2xf32>
    %119 = tpu.matmul %116, %2, %cst_54 {dimension_numbers = #tpu.dot_dimension_numbers<[1], [0], [0], [1], [0, 0, 1, 1], [], []>} : vector<2x32xf32>, vector<32x2xf32>, vector<2x2xf32> -> vector<2x2xf32>
    %120 = arith.addf %92, %119 : vector<2x2xf32>
    %121 = math.tanh %120 : vector<2x2xf32>
    %c0_55 = arith.constant 0 : index
    %c0_56 = arith.constant 0 : index
    %122 = vector.load %arg4[%c0_55, %c0_56] : memref<2x2xf32, #tpu.memory_space<vmem>>, vector<2x2xf32>
    tpu.vector_store %arg4[%c0_55, %c0_56], %121 {strides = array<i32>} : memref<2x2xf32, #tpu.memory_space<vmem>>, vector<2x2xf32>,
    return
  }
}

</mosaic_0001>

<llo_original>
// kernel: tpu_custom_call.1
$region0: #{tpu_custom_call.1}
  #allocation0 [shape = 'u32[]', space=smem, size = 0x4, offset = 0x4, fixed_abs, tag = 'smem constant byte address 0x4 - core index']
  #allocation1 [shape = 'u32[144,128]{1,0:T(1,128)}', space=vmem, size = 0x12000, scoped, tag = 'internal scratch']
  %s0 = inlined_call_operand.vmem [shape: f32[2,4], index: 0, kind: input, shape index: {}]
  %s1 = inlined_call_operand.vmem [shape: f32[4,32], index: 1, kind: input, shape index: {}]
  %s2 = inlined_call_operand.vmem [shape: f32[32,32], index: 2, kind: input, shape index: {}]
  %s3 = inlined_call_operand.vmem [shape: f32[32,2], index: 3, kind: input, shape index: {}]
  %s4 = inlined_call_operand.hbm [shape: f32[2,2], index: 4, kind: output, shape index: {}]
  %s5 = sld [smem:[#allocation0]]
  $region26: #{tpu_custom_call.1} parent=0
    _
  %s7 = ssub.s32 1, %s5
  %s8 = scalar_select 0, %s7, %s5
  $region1: #{tpu_custom_call.1} parent=0
    #allocation2 [shape = 'u8[1024]{0}', space=vmem, size = 0x400, scoped, tag = 'output window, operand 0, single buffered']
    #allocation3 [shape = 's32[1]{0}', space=sflag, size = 0x4, scoped, tag = 'scoped memory for tpu_custom_call.1']
    %9 = vsyncpa [#allocation3], 0
    // Predicated region
    $region2: #{tpu_custom_call.1} parent=1 // pred_check
      _
    $region3: #{tpu_custom_call.1} parent=1 // pred_check_branch
      %11 = sbr.rel (0) target = $region5
    $region4: #{tpu_custom_call.1} parent=1 // pred_region
      _
    $region5: #{tpu_custom_call.1} parent=1 // pred_fallthru
      _
    // Predicated region
    $region6: #{tpu_custom_call.1} parent=1 // pred_check
      _
    $region7: #{tpu_custom_call.1} parent=1 // pred_check_branch
      %13 = sbr.rel (0) target = $region9
    $region8: #{tpu_custom_call.1} parent=1 // pred_region
      _
    $region9: #{tpu_custom_call.1} parent=1 // pred_fallthru
      _
    // Predicated region
    $region10: #{tpu_custom_call.1} parent=1 // pred_check
      _
    $region11: #{tpu_custom_call.1} parent=1 // pred_check_branch
      %15 = sbr.rel (0) target = $region13
    $region12: #{tpu_custom_call.1} parent=1 // pred_region
      _
    $region13: #{tpu_custom_call.1} parent=1 // pred_fallthru
      _
    // Predicated region
    $region14: #{tpu_custom_call.1} parent=1 // pred_check
      _
    $region15: #{tpu_custom_call.1} parent=1 // pred_check_branch
      %17 = sbr.rel (0) target = $region17
    $region16: #{tpu_custom_call.1} parent=1 // pred_region
      _
    $region17: #{tpu_custom_call.1} parent=1 // pred_fallthru
      _
    %v18 = vld [vmem:[%s1] sm:$0xf]
    %v19 = vld [vmem:[%s2] sm:$0xff]
    %v20 = vld [vmem:[%s2 + $0x8] sm:$0xff]
    %v21 = vld [vmem:[%s2 + $0x10] sm:$0xff]
    %v22 = vld [vmem:[%s2 + $0x18] sm:$0xff]
    %v23 = vld [vmem:[%s3] sm:$0xff]
    %v24 = vld [vmem:[%s3 + $0x8] sm:$0xff]
    %v25 = vld [vmem:[%s3 + $0x10] sm:$0xff]
    %v26 = vld [vmem:[%s3 + $0x18] sm:$0xff]
    %v27 = vld [vmem:[%s0] sm:$0x3]
    %vm28 = vcmask 31744
    %v30 = vsel %vm28, %v27, 0
    %vm32 = vcmask 1043456
    %v34 = vsel %vm32, %v18, 0
    %36 = vmatprep.subr.mxu0 0.0
    %37 = vmatpush1.msra.mxu0 %v34
    %38 = vmatprep.subr.mxu0 0.0
    %39 = vmatpush1.msra.mxu0 0.0
    %40 = vmatprep.subr.mxu0 0.0
    %41 = vmatpush1.msra.mxu0 0.0
    %42 = vmatprep.subr.mxu0 0.0
    %43 = vmatpush1.msra.mxu0 0.0
    %44 = vmatprep.subr.mxu0 0.0
    %45 = vmatpush1.msra.mxu0 0.0
    %46 = vmatprep.subr.mxu0 0.0
    %47 = vmatpush1.msra.mxu0 0.0
    %48 = vmatprep.subr.mxu0 0.0
    %49 = vmatpush1.msra.mxu0 0.0
    %50 = vmatprep.subr.mxu0 0.0
    %51 = vmatpush1.msra.mxu0 0.0
    %52 = vmatprep.subr.mxu0 0.0
    %53 = vmatpush1.msra.mxu0 0.0
    %54 = vmatprep.subr.mxu0 0.0
    %55 = vmatpush1.msra.mxu0 0.0
    %56 = vmatprep.subr.mxu0 0.0
    %57 = vmatpush1.msra.mxu0 0.0
    %58 = vmatprep.subr.mxu0 0.0
    %59 = vmatpush1.msra.mxu0 0.0
    %60 = vmatprep.subr.mxu0 0.0
    %61 = vmatpush1.msra.mxu0 0.0
    %62 = vmatprep.subr.mxu0 0.0
    %63 = vmatpush1.msra.mxu0 0.0
    %64 = vmatprep.subr.mxu0 0.0
    %65 = vmatpush1.msra.mxu0 0.0
    %66 = vmatprep.subr.mxu0 0.0
    %67 = vmatpush1.msra.mxu0 0.0
    %68 = vmatprep.subr.mxu0 0.0
    %69 = vmatpush1.msra.mxu0 0.0
    %70 = vmatprep.subr.mxu0 0.0
    %71 = vmatpush1.msra.mxu0 0.0
    %72 = vmatprep.subr.mxu0 0.0
    %73 = vmatpush1.msra.mxu0 0.0
    %74 = vmatprep.subr.mxu0 0.0
    %75 = vmatpush1.msra.mxu0 0.0
    %76 = vmatprep.subr.mxu0 0.0
    %77 = vmatpush1.msra.mxu0 0.0
    %78 = vmatprep.subr.mxu0 0.0
    %79 = vmatpush1.msra.mxu0 0.0
    %80 = vmatprep.subr.mxu0 0.0
    %81 = vmatpush1.msra.mxu0 0.0
    %82 = vmatprep.subr.mxu0 0.0
    %83 = vmatpush1.msra.mxu0 0.0
    %84 = vmatprep.subr.mxu0 0.0
    %85 = vmatpush1.msra.mxu0 0.0
    %86 = vmatprep.subr.mxu0 0.0
    %87 = vmatpush1.msra.mxu0 0.0
    %88 = vmatprep.subr.mxu0 0.0
    %89 = vmatpush1.msra.mxu0 0.0
    %90 = vmatprep.subr.mxu0 0.0
    %91 = vmatpush1.msra.mxu0 0.0
    %92 = vmatprep.subr.mxu0 0.0
    %93 = vmatpush1.msra.mxu0 0.0
    %94 = vmatprep.subr.mxu0 0.0
    %95 = vmatpush1.msra.mxu0 0.0
    %96 = vmatprep.subr.mxu0 0.0
    %97 = vmatpush1.msra.mxu0 0.0
    %98 = vmatprep.subr.mxu0 0.0
    %99 = vmatpush1.msra.mxu0 0.0
    %100 = vmatprep.mubr.f32.mxu0 0.0
    %101 = vmatmul.mubr.f32.gmra.mrb[0].mxu0 %v30
    %v102 = vpop.f32.mrb[0].mxu0
    %v103 = vadd.f32 0.0, %v102
    %v104 = vpop.f32.mrb[0].mxu0
    %105 = vdwg.mxu0
    %v106 = vadd.f32 %v103, 0.0
    %v107 = vsub.f32 %v106, 0.1
    %vm108 = vcmp.gt.f32.partialorder %v107, 0.0
    %v109 = vsel %vm108, 1, 0
    %v110 = vcvt.s32.f32 %v109
    %v111 = vsel %vm108, 0.0, %v106
    %vm112 = vcmask 261120
    %v114 = vsel %vm112, %v110, 0
    %116 = vmatprep.subr.mxu0 0.0
    %117 = vmatpush1.msra.mxu0 %v19
    %118 = vmatprep.subr.mxu0 0.0
    %119 = vmatpush1.msra.mxu0 %v20
    %120 = vmatprep.subr.mxu0 0.0
    %121 = vmatpush1.msra.mxu0 %v21
    %122 = vmatprep.subr.mxu0 0.0
    %123 = vmatpush1.msra.mxu0 %v22
    %124 = vmatprep.subr.mxu0 0.0
    %125 = vmatpush1.msra.mxu0 0.0
    %126 = vmatprep.subr.mxu0 0.0
    %127 = vmatpush1.msra.mxu0 0.0
    %128 = vmatprep.subr.mxu0 0.0
    %129 = vmatpush1.msra.mxu0 0.0
    %130 = vmatprep.subr.mxu0 0.0
    %131 = vmatpush1.msra.mxu0 0.0
    %132 = vmatprep.subr.mxu0 0.0
    %133 = vmatpush1.msra.mxu0 0.0
    %134 = vmatprep.subr.mxu0 0.0
    %135 = vmatpush1.msra.mxu0 0.0
    %136 = vmatprep.subr.mxu0 0.0
    %137 = vmatpush1.msra.mxu0 0.0
    %138 = vmatprep.subr.mxu0 0.0
    %139 = vmatpush1.msra.mxu0 0.0
    %140 = vmatprep.subr.mxu0 0.0
    %141 = vmatpush1.msra.mxu0 0.0
    %142 = vmatprep.subr.mxu0 0.0
    %143 = vmatpush1.msra.mxu0 0.0
    %144 = vmatprep.subr.mxu0 0.0
    %145 = vmatpush1.msra.mxu0 0.0
    %146 = vmatprep.subr.mxu0 0.0
    %147 = vmatpush1.msra.mxu0 0.0
    %148 = vmatprep.subr.mxu0 0.0
    %149 = vmatpush1.msra.mxu0 0.0
    %150 = vmatprep.subr.mxu0 0.0
    %151 = vmatpush1.msra.mxu0 0.0
    %152 = vmatprep.subr.mxu0 0.0
    %153 = vmatpush1.msra.mxu0 0.0
    %154 = vmatprep.subr.mxu0 0.0
    %155 = vmatpush1.msra.mxu0 0.0
    %156 = vmatprep.subr.mxu0 0.0
    %157 = vmatpush1.msra.mxu0 0.0
    %158 = vmatprep.subr.mxu0 0.0
    %159 = vmatpush1.msra.mxu0 0.0
    %160 = vmatprep.subr.mxu0 0.0
    %161 = vmatpush1.msra.mxu0 0.0
    %162 = vmatprep.subr.mxu0 0.0
    %163 = vmatpush1.msra.mxu0 0.0
    %164 = vmatprep.subr.mxu0 0.0
    %165 = vmatpush1.msra.mxu0 0.0
    %166 = vmatprep.subr.mxu0 0.0
    %167 = vmatpush1.msra.mxu0 0.0
    %168 = vmatprep.subr.mxu0 0.0
    %169 = vmatpush1.msra.mxu0 0.0
    %170 = vmatprep.subr.mxu0 0.0
    %171 = vmatpush1.msra.mxu0 0.0
    %172 = vmatprep.subr.mxu0 0.0
    %173 = vmatpush1.msra.mxu0 0.0
    %174 = vmatprep.subr.mxu0 0.0
    %175 = vmatpush1.msra.mxu0 0.0
    %176 = vmatprep.subr.mxu0 0.0
    %177 = vmatpush1.msra.mxu0 0.0
    %178 = vmatprep.subr.mxu0 0.0
    %179 = vmatpush1.msra.mxu0 0.0
    %180 = vmatprep.mubr.f32.mxu0 0.0
    %181 = vmatmul.mubr.f32.gmra.mrb[0].mxu0 %v114
    %v182 = vpop.f32.mrb[0].mxu0
    %v183 = vadd.f32 0.0, %v182
    %v184 = vpop.f32.mrb[0].mxu0
    %185 = vdwg.mxu0
    %v186 = vadd.f32 %v183, 0.0
    %v187 = vsub.f32 %v186, 0.1
    %vm188 = vcmp.gt.f32.partialorder %v187, 0.0
    %v189 = vsel %vm188, 1, 0
    %v190 = vcvt.s32.f32 %v189
    %v191 = vsel %vm188, 0.0, %v186
    %v192 = vmul.f32 %v111, 0.5
    %v193 = vadd.f32 %v192, %v103
    %v194 = vsub.f32 %v193, 0.1
    %vm195 = vcmp.gt.f32.partialorder %v194, 0.0
    %v196 = vsel %vm195, 1, 0
    %v197 = vcvt.s32.f32 %v196
    %v198 = vsel %vm195, 0.0, %v193
    %v200 = vsel %vm112, %v197, 0
    %202 = vmatprep.subr.mxu0 0.0
    %203 = vmatpush1.msra.mxu0 %v19
    %204 = vmatprep.subr.mxu0 0.0
    %205 = vmatpush1.msra.mxu0 %v20
    %206 = vmatprep.subr.mxu0 0.0
    %207 = vmatpush1.msra.mxu0 %v21
    %208 = vmatprep.subr.mxu0 0.0
    %209 = vmatpush1.msra.mxu0 %v22
    %210 = vmatprep.subr.mxu0 0.0
    %211 = vmatpush1.msra.mxu0 0.0
    %212 = vmatprep.subr.mxu0 0.0
    %213 = vmatpush1.msra.mxu0 0.0
    %214 = vmatprep.subr.mxu0 0.0
    %215 = vmatpush1.msra.mxu0 0.0
    %216 = vmatprep.subr.mxu0 0.0
    %217 = vmatpush1.msra.mxu0 0.0
    %218 = vmatprep.subr.mxu0 0.0
    %219 = vmatpush1.msra.mxu0 0.0
    %220 = vmatprep.subr.mxu0 0.0
    %221 = vmatpush1.msra.mxu0 0.0
    %222 = vmatprep.subr.mxu0 0.0
    %223 = vmatpush1.msra.mxu0 0.0
    %224 = vmatprep.subr.mxu0 0.0
    %225 = vmatpush1.msra.mxu0 0.0
    %226 = vmatprep.subr.mxu0 0.0
    %227 = vmatpush1.msra.mxu0 0.0
    %228 = vmatprep.subr.mxu0 0.0
    %229 = vmatpush1.msra.mxu0 0.0
    %230 = vmatprep.subr.mxu0 0.0
    %231 = vmatpush1.msra.mxu0 0.0
    %232 = vmatprep.subr.mxu0 0.0
    %233 = vmatpush1.msra.mxu0 0.0
    %234 = vmatprep.subr.mxu0 0.0
    %235 = vmatpush1.msra.mxu0 0.0
    %236 = vmatprep.subr.mxu0 0.0
    %237 = vmatpush1.msra.mxu0 0.0
    %238 = vmatprep.subr.mxu0 0.0
    %239 = vmatpush1.msra.mxu0 0.0
    %240 = vmatprep.subr.mxu0 0.0
    %241 = vmatpush1.msra.mxu0 0.0
    %242 = vmatprep.subr.mxu0 0.0
    %243 = vmatpush1.msra.mxu0 0.0
    %244 = vmatprep.subr.mxu0 0.0
    %245 = vmatpush1.msra.mxu0 0.0
    %246 = vmatprep.subr.mxu0 0.0
    %247 = vmatpush1.msra.mxu0 0.0
    %248 = vmatprep.subr.mxu0 0.0
    %249 = vmatpush1.msra.mxu0 0.0
    %250 = vmatprep.subr.mxu0 0.0
    %251 = vmatpush1.msra.mxu0 0.0
    %252 = vmatprep.subr.mxu0 0.0
    %253 = vmatpush1.msra.mxu0 0.0
    %254 = vmatprep.subr.mxu0 0.0
    %255 = vmatpush1.msra.mxu0 0.0
    %256 = vmatprep.subr.mxu0 0.0
    %257 = vmatpush1.msra.mxu0 0.0
    %258 = vmatprep.subr.mxu0 0.0
    %259 = vmatpush1.msra.mxu0 0.0
    %260 = vmatprep.subr.mxu0 0.0
    %261 = vmatpush1.msra.mxu0 0.0
    %262 = vmatprep.subr.mxu0 0.0
    %263 = vmatpush1.msra.mxu0 0.0
    %264 = vmatprep.subr.mxu0 0.0
    %265 = vmatpush1.msra.mxu0 0.0
    %266 = vmatprep.mubr.f32.mxu0 0.0
    %267 = vmatmul.mubr.f32.gmra.mrb[0].mxu0 %v200
    %v268 = vpop.f32.mrb[0].mxu0
    %v269 = vadd.f32 0.0, %v268
    %v270 = vpop.f32.mrb[0].mxu0
    %271 = vdwg.mxu0
    %v272 = vmul.f32 %v183, 0.5
    %v273 = vadd.f32 %v272, %v269
    %v274 = vmul.f32 %v191, 0.5
    %v275 = vadd.f32 %v274, %v273
    %v276 = vsub.f32 %v275, 0.1
    %vm277 = vcmp.gt.f32.partialorder %v276, 0.0
    %v278 = vsel %vm277, 1, 0
    %v279 = vcvt.s32.f32 %v278
    %v280 = vsel %vm277, 0.0, %v275
    %v282 = vsel %vm112, %v279, 0
    %284 = vmatprep.subr.mxu0 0.0
    %285 = vmatpush1.msra.mxu0 %v23
    %286 = vmatprep.subr.mxu0 0.0
    %287 = vmatpush1.msra.mxu0 %v24
    %288 = vmatprep.subr.mxu0 0.0
    %289 = vmatpush1.msra.mxu0 %v25
    %290 = vmatprep.subr.mxu0 0.0
    %291 = vmatpush1.msra.mxu0 %v26
    %292 = vmatprep.subr.mxu0 0.0
    %293 = vmatpush1.msra.mxu0 0.0
    %294 = vmatprep.subr.mxu0 0.0
    %295 = vmatpush1.msra.mxu0 0.0
    %296 = vmatprep.subr.mxu0 0.0
    %297 = vmatpush1.msra.mxu0 0.0
    %298 = vmatprep.subr.mxu0 0.0
    %299 = vmatpush1.msra.mxu0 0.0
    %300 = vmatprep.subr.mxu0 0.0
    %301 = vmatpush1.msra.mxu0 0.0
    %302 = vmatprep.subr.mxu0 0.0
    %303 = vmatpush1.msra.mxu0 0.0
    %304 = vmatprep.subr.mxu0 0.0
    %305 = vmatpush1.msra.mxu0 0.0
    %306 = vmatprep.subr.mxu0 0.0
    %307 = vmatpush1.msra.mxu0 0.0
    %308 = vmatprep.subr.mxu0 0.0
    %309 = vmatpush1.msra.mxu0 0.0
    %310 = vmatprep.subr.mxu0 0.0
    %311 = vmatpush1.msra.mxu0 0.0
    %312 = vmatprep.subr.mxu0 0.0
    %313 = vmatpush1.msra.mxu0 0.0
    %314 = vmatprep.subr.mxu0 0.0
    %315 = vmatpush1.msra.mxu0 0.0
    %316 = vmatprep.subr.mxu0 0.0
    %317 = vmatpush1.msra.mxu0 0.0
    %318 = vmatprep.subr.mxu0 0.0
    %319 = vmatpush1.msra.mxu0 0.0
    %320 = vmatprep.subr.mxu0 0.0
    %321 = vmatpush1.msra.mxu0 0.0
    %322 = vmatprep.subr.mxu0 0.0
    %323 = vmatpush1.msra.mxu0 0.0
    %324 = vmatprep.subr.mxu0 0.0
    %325 = vmatpush1.msra.mxu0 0.0
    %326 = vmatprep.subr.mxu0 0.0
    %327 = vmatpush1.msra.mxu0 0.0
    %328 = vmatprep.subr.mxu0 0.0
    %329 = vmatpush1.msra.mxu0 0.0
    %330 = vmatprep.subr.mxu0 0.0
    %331 = vmatpush1.msra.mxu0 0.0
    %332 = vmatprep.subr.mxu0 0.0
    %333 = vmatpush1.msra.mxu0 0.0
    %334 = vmatprep.subr.mxu0 0.0
    %335 = vmatpush1.msra.mxu0 0.0
    %336 = vmatprep.subr.mxu0 0.0
    %337 = vmatpush1.msra.mxu0 0.0
    %338 = vmatprep.subr.mxu0 0.0
    %339 = vmatpush1.msra.mxu0 0.0
    %340 = vmatprep.subr.mxu0 0.0
    %341 = vmatpush1.msra.mxu0 0.0
    %342 = vmatprep.subr.mxu0 0.0
    %343 = vmatpush1.msra.mxu0 0.0
    %344 = vmatprep.subr.mxu0 0.0
    %345 = vmatpush1.msra.mxu0 0.0
    %346 = vmatprep.subr.mxu0 0.0
    %347 = vmatpush1.msra.mxu0 0.0
    %348 = vmatprep.mubr.f32.mxu0 0.0
    %349 = vmatmul.mubr.f32.gmra.mrb[0].mxu0 %v282
    %v350 = vpop.f32.mrb[0].mxu0
    %v351 = vadd.f32 0.0, %v350
    %v352 = vpop.f32.mrb[0].mxu0
    %353 = vdwg.mxu0
    %v355 = vsel %vm112, %v190, 0
    %357 = vmatprep.subr.mxu0 0.0
    %358 = vmatpush1.msra.mxu0 %v23
    %359 = vmatprep.subr.mxu0 0.0
    %360 = vmatpush1.msra.mxu0 %v24
    %361 = vmatprep.subr.mxu0 0.0
    %362 = vmatpush1.msra.mxu0 %v25
    %363 = vmatprep.subr.mxu0 0.0
    %364 = vmatpush1.msra.mxu0 %v26
    %365 = vmatprep.subr.mxu0 0.0
    %366 = vmatpush1.msra.mxu0 0.0
    %367 = vmatprep.subr.mxu0 0.0
    %368 = vmatpush1.msra.mxu0 0.0
    %369 = vmatprep.subr.mxu0 0.0
    %370 = vmatpush1.msra.mxu0 0.0
    %371 = vmatprep.subr.mxu0 0.0
    %372 = vmatpush1.msra.mxu0 0.0
    %373 = vmatprep.subr.mxu0 0.0
    %374 = vmatpush1.msra.mxu0 0.0
    %375 = vmatprep.subr.mxu0 0.0
    %376 = vmatpush1.msra.mxu0 0.0
    %377 = vmatprep.subr.mxu0 0.0
    %378 = vmatpush1.msra.mxu0 0.0
    %379 = vmatprep.subr.mxu0 0.0
    %380 = vmatpush1.msra.mxu0 0.0
    %381 = vmatprep.subr.mxu0 0.0
    %382 = vmatpush1.msra.mxu0 0.0
    %383 = vmatprep.subr.mxu0 0.0
    %384 = vmatpush1.msra.mxu0 0.0
    %385 = vmatprep.subr.mxu0 0.0
    %386 = vmatpush1.msra.mxu0 0.0
    %387 = vmatprep.subr.mxu0 0.0
    %388 = vmatpush1.msra.mxu0 0.0
    %389 = vmatprep.subr.mxu0 0.0
    %390 = vmatpush1.msra.mxu0 0.0
    %391 = vmatprep.subr.mxu0 0.0
    %392 = vmatpush1.msra.mxu0 0.0
    %393 = vmatprep.subr.mxu0 0.0
    %394 = vmatpush1.msra.mxu0 0.0
    %395 = vmatprep.subr.mxu0 0.0
    %396 = vmatpush1.msra.mxu0 0.0
    %397 = vmatprep.subr.mxu0 0.0
    %398 = vmatpush1.msra.mxu0 0.0
    %399 = vmatprep.subr.mxu0 0.0
    %400 = vmatpush1.msra.mxu0 0.0
    %401 = vmatprep.subr.mxu0 0.0
    %402 = vmatpush1.msra.mxu0 0.0
    %403 = vmatprep.subr.mxu0 0.0
    %404 = vmatpush1.msra.mxu0 0.0
    %405 = vmatprep.subr.mxu0 0.0
    %406 = vmatpush1.msra.mxu0 0.0
    %407 = vmatprep.subr.mxu0 0.0
    %408 = vmatpush1.msra.mxu0 0.0
    %409 = vmatprep.subr.mxu0 0.0
    %410 = vmatpush1.msra.mxu0 0.0
    %411 = vmatprep.subr.mxu0 0.0
    %412 = vmatpush1.msra.mxu0 0.0
    %413 = vmatprep.subr.mxu0 0.0
    %414 = vmatpush1.msra.mxu0 0.0
    %415 = vmatprep.subr.mxu0 0.0
    %416 = vmatpush1.msra.mxu0 0.0
    %417 = vmatprep.subr.mxu0 0.0
    %418 = vmatpush1.msra.mxu0 0.0
    %419 = vmatprep.subr.mxu0 0.0
    %420 = vmatpush1.msra.mxu0 0.0
    %421 = vmatprep.mubr.f32.mxu0 0.0
    %422 = vmatmul.mubr.f32.gmra.mrb[0].mxu0 %v355
    %v423 = vpop.f32.mrb[0].mxu0
    %v424 = vadd.f32 %v351, %v423
    %v425 = vpop.f32.mrb[0].mxu0
    %426 = vdwg.mxu0
    %v427 = vmul.f32 %v198, 0.5
    %v428 = vadd.f32 %v427, %v103
    %v429 = vsub.f32 %v428, 0.1
    %vm430 = vcmp.gt.f32.partialorder %v429, 0.0
    %v431 = vsel %vm430, 1, 0
    %v432 = vcvt.s32.f32 %v431
    %v433 = vsel %vm430, 0.0, %v428
    %v435 = vsel %vm112, %v432, 0
    %437 = vmatprep.subr.mxu0 0.0
    %438 = vmatpush1.msra.mxu0 %v19
    %439 = vmatprep.subr.mxu0 0.0
    %440 = vmatpush1.msra.mxu0 %v20
    %441 = vmatprep.subr.mxu0 0.0
    %442 = vmatpush1.msra.mxu0 %v21
    %443 = vmatprep.subr.mxu0 0.0
    %444 = vmatpush1.msra.mxu0 %v22
    %445 = vmatprep.subr.mxu0 0.0
    %446 = vmatpush1.msra.mxu0 0.0
    %447 = vmatprep.subr.mxu0 0.0
    %448 = vmatpush1.msra.mxu0 0.0
    %449 = vmatprep.subr.mxu0 0.0
    %450 = vmatpush1.msra.mxu0 0.0
    %451 = vmatprep.subr.mxu0 0.0
    %452 = vmatpush1.msra.mxu0 0.0
    %453 = vmatprep.subr.mxu0 0.0
    %454 = vmatpush1.msra.mxu0 0.0
    %455 = vmatprep.subr.mxu0 0.0
    %456 = vmatpush1.msra.mxu0 0.0
    %457 = vmatprep.subr.mxu0 0.0
    %458 = vmatpush1.msra.mxu0 0.0
    %459 = vmatprep.subr.mxu0 0.0
    %460 = vmatpush1.msra.mxu0 0.0
    %461 = vmatprep.subr.mxu0 0.0
    %462 = vmatpush1.msra.mxu0 0.0
    %463 = vmatprep.subr.mxu0 0.0
    %464 = vmatpush1.msra.mxu0 0.0
    %465 = vmatprep.subr.mxu0 0.0
    %466 = vmatpush1.msra.mxu0 0.0
    %467 = vmatprep.subr.mxu0 0.0
    %468 = vmatpush1.msra.mxu0 0.0
    %469 = vmatprep.subr.mxu0 0.0
    %470 = vmatpush1.msra.mxu0 0.0
    %471 = vmatprep.subr.mxu0 0.0
    %472 = vmatpush1.msra.mxu0 0.0
    %473 = vmatprep.subr.mxu0 0.0
    %474 = vmatpush1.msra.mxu0 0.0
    %475 = vmatprep.subr.mxu0 0.0
    %476 = vmatpush1.msra.mxu0 0.0
    %477 = vmatprep.subr.mxu0 0.0
    %478 = vmatpush1.msra.mxu0 0.0
    %479 = vmatprep.subr.mxu0 0.0
    %480 = vmatpush1.msra.mxu0 0.0
    %481 = vmatprep.subr.mxu0 0.0
    %482 = vmatpush1.msra.mxu0 0.0
    %483 = vmatprep.subr.mxu0 0.0
    %484 = vmatpush1.msra.mxu0 0.0
    %485 = vmatprep.subr.mxu0 0.0
    %486 = vmatpush1.msra.mxu0 0.0
    %487 = vmatprep.subr.mxu0 0.0
    %488 = vmatpush1.msra.mxu0 0.0
    %489 = vmatprep.subr.mxu0 0.0
    %490 = vmatpush1.msra.mxu0 0.0
    %491 = vmatprep.subr.mxu0 0.0
    %492 = vmatpush1.msra.mxu0 0.0
    %493 = vmatprep.subr.mxu0 0.0
    %494 = vmatpush1.msra.mxu0 0.0
    %495 = vmatprep.subr.mxu0 0.0
    %496 = vmatpush1.msra.mxu0 0.0
    %497 = vmatprep.subr.mxu0 0.0
    %498 = vmatpush1.msra.mxu0 0.0
    %499 = vmatprep.subr.mxu0 0.0
    %500 = vmatpush1.msra.mxu0 0.0
    %501 = vmatprep.mubr.f32.mxu0 0.0
    %502 = vmatmul.mubr.f32.gmra.mrb[0].mxu0 %v435
    %v503 = vpop.f32.mrb[0].mxu0
    %v504 = vadd.f32 0.0, %v503
    %v505 = vpop.f32.mrb[0].mxu0
    %506 = vdwg.mxu0
    %v507 = vmul.f32 %v273, 0.5
    %v508 = vadd.f32 %v507, %v504
    %v509 = vmul.f32 %v280, 0.5
    %v510 = vadd.f32 %v509, %v508
    %v511 = vsub.f32 %v510, 0.1
    %vm512 = vcmp.gt.f32.partialorder %v511, 0.0
    %v513 = vsel %vm512, 1, 0
    %v514 = vcvt.s32.f32 %v513
    %v515 = vsel %vm512, 0.0, %v510
    %v517 = vsel %vm112, %v514, 0
    %519 = vmatprep.subr.mxu0 0.0
    %520 = vmatpush1.msra.mxu0 %v23
    %521 = vmatprep.subr.mxu0 0.0
    %522 = vmatpush1.msra.mxu0 %v24
    %523 = vmatprep.subr.mxu0 0.0
    %524 = vmatpush1.msra.mxu0 %v25
    %525 = vmatprep.subr.mxu0 0.0
    %526 = vmatpush1.msra.mxu0 %v26
    %527 = vmatprep.subr.mxu0 0.0
    %528 = vmatpush1.msra.mxu0 0.0
    %529 = vmatprep.subr.mxu0 0.0
    %530 = vmatpush1.msra.mxu0 0.0
    %531 = vmatprep.subr.mxu0 0.0
    %532 = vmatpush1.msra.mxu0 0.0
    %533 = vmatprep.subr.mxu0 0.0
    %534 = vmatpush1.msra.mxu0 0.0
    %535 = vmatprep.subr.mxu0 0.0
    %536 = vmatpush1.msra.mxu0 0.0
    %537 = vmatprep.subr.mxu0 0.0
    %538 = vmatpush1.msra.mxu0 0.0
    %539 = vmatprep.subr.mxu0 0.0
    %540 = vmatpush1.msra.mxu0 0.0
    %541 = vmatprep.subr.mxu0 0.0
    %542 = vmatpush1.msra.mxu0 0.0
    %543 = vmatprep.subr.mxu0 0.0
    %544 = vmatpush1.msra.mxu0 0.0
    %545 = vmatprep.subr.mxu0 0.0
    %546 = vmatpush1.msra.mxu0 0.0
    %547 = vmatprep.subr.mxu0 0.0
    %548 = vmatpush1.msra.mxu0 0.0
    %549 = vmatprep.subr.mxu0 0.0
    %550 = vmatpush1.msra.mxu0 0.0
    %551 = vmatprep.subr.mxu0 0.0
    %552 = vmatpush1.msra.mxu0 0.0
    %553 = vmatprep.subr.mxu0 0.0
    %554 = vmatpush1.msra.mxu0 0.0
    %555 = vmatprep.subr.mxu0 0.0
    %556 = vmatpush1.msra.mxu0 0.0
    %557 = vmatprep.subr.mxu0 0.0
    %558 = vmatpush1.msra.mxu0 0.0
    %559 = vmatprep.subr.mxu0 0.0
    %560 = vmatpush1.msra.mxu0 0.0
    %561 = vmatprep.subr.mxu0 0.0
    %562 = vmatpush1.msra.mxu0 0.0
    %563 = vmatprep.subr.mxu0 0.0
    %564 = vmatpush1.msra.mxu0 0.0
    %565 = vmatprep.subr.mxu0 0.0
    %566 = vmatpush1.msra.mxu0 0.0
    %567 = vmatprep.subr.mxu0 0.0
    %568 = vmatpush1.msra.mxu0 0.0
    %569 = vmatprep.subr.mxu0 0.0
    %570 = vmatpush1.msra.mxu0 0.0
    %571 = vmatprep.subr.mxu0 0.0
    %572 = vmatpush1.msra.mxu0 0.0
    %573 = vmatprep.subr.mxu0 0.0
    %574 = vmatpush1.msra.mxu0 0.0
    %575 = vmatprep.subr.mxu0 0.0
    %576 = vmatpush1.msra.mxu0 0.0
    %577 = vmatprep.subr.mxu0 0.0
    %578 = vmatpush1.msra.mxu0 0.0
    %579 = vmatprep.subr.mxu0 0.0
    %580 = vmatpush1.msra.mxu0 0.0
    %581 = vmatprep.subr.mxu0 0.0
    %582 = vmatpush1.msra.mxu0 0.0
    %583 = vmatprep.mubr.f32.mxu0 0.0
    %584 = vmatmul.mubr.f32.gmra.mrb[0].mxu0 %v517
    %v585 = vpop.f32.mrb[0].mxu0
    %v586 = vadd.f32 0.0, %v585
    %v587 = vpop.f32.mrb[0].mxu0
    %588 = vdwg.mxu0
    %v589 = vadd.f32 %v424, %v586
    %v590 = vmul.f32 %v433, 0.5
    %v591 = vadd.f32 %v590, %v103
    %v592 = vsub.f32 %v591, 0.1
    %vm593 = vcmp.gt.f32.partialorder %v592, 0.0
    %v594 = vsel %vm593, 1, 0
    %v595 = vcvt.s32.f32 %v594
    %v597 = vsel %vm112, %v595, 0
    %599 = vmatprep.subr.mxu0 0.0
    %600 = vmatpush1.msra.mxu0 %v19
    %601 = vmatprep.subr.mxu0 0.0
    %602 = vmatpush1.msra.mxu0 %v20
    %603 = vmatprep.subr.mxu0 0.0
    %604 = vmatpush1.msra.mxu0 %v21
    %605 = vmatprep.subr.mxu0 0.0
    %606 = vmatpush1.msra.mxu0 %v22
    %607 = vmatprep.subr.mxu0 0.0
    %608 = vmatpush1.msra.mxu0 0.0
    %609 = vmatprep.subr.mxu0 0.0
    %610 = vmatpush1.msra.mxu0 0.0
    %611 = vmatprep.subr.mxu0 0.0
    %612 = vmatpush1.msra.mxu0 0.0
    %613 = vmatprep.subr.mxu0 0.0
    %614 = vmatpush1.msra.mxu0 0.0
    %615 = vmatprep.subr.mxu0 0.0
    %616 = vmatpush1.msra.mxu0 0.0
    %617 = vmatprep.subr.mxu0 0.0
    %618 = vmatpush1.msra.mxu0 0.0
    %619 = vmatprep.subr.mxu0 0.0
    %620 = vmatpush1.msra.mxu0 0.0
    %621 = vmatprep.subr.mxu0 0.0
    %622 = vmatpush1.msra.mxu0 0.0
    %623 = vmatprep.subr.mxu0 0.0
    %624 = vmatpush1.msra.mxu0 0.0
    %625 = vmatprep.subr.mxu0 0.0
    %626 = vmatpush1.msra.mxu0 0.0
    %627 = vmatprep.subr.mxu0 0.0
    %628 = vmatpush1.msra.mxu0 0.0
    %629 = vmatprep.subr.mxu0 0.0
    %630 = vmatpush1.msra.mxu0 0.0
    %631 = vmatprep.subr.mxu0 0.0
    %632 = vmatpush1.msra.mxu0 0.0
    %633 = vmatprep.subr.mxu0 0.0
    %634 = vmatpush1.msra.mxu0 0.0
    %635 = vmatprep.subr.mxu0 0.0
    %636 = vmatpush1.msra.mxu0 0.0
    %637 = vmatprep.subr.mxu0 0.0
    %638 = vmatpush1.msra.mxu0 0.0
    %639 = vmatprep.subr.mxu0 0.0
    %640 = vmatpush1.msra.mxu0 0.0
    %641 = vmatprep.subr.mxu0 0.0
    %642 = vmatpush1.msra.mxu0 0.0
    %643 = vmatprep.subr.mxu0 0.0
    %644 = vmatpush1.msra.mxu0 0.0
    %645 = vmatprep.subr.mxu0 0.0
    %646 = vmatpush1.msra.mxu0 0.0
    %647 = vmatprep.subr.mxu0 0.0
    %648 = vmatpush1.msra.mxu0 0.0
    %649 = vmatprep.subr.mxu0 0.0
    %650 = vmatpush1.msra.mxu0 0.0
    %651 = vmatprep.subr.mxu0 0.0
    %652 = vmatpush1.msra.mxu0 0.0
    %653 = vmatprep.subr.mxu0 0.0
    %654 = vmatpush1.msra.mxu0 0.0
    %655 = vmatprep.subr.mxu0 0.0
    %656 = vmatpush1.msra.mxu0 0.0
    %657 = vmatprep.subr.mxu0 0.0
    %658 = vmatpush1.msra.mxu0 0.0
    %659 = vmatprep.subr.mxu0 0.0
    %660 = vmatpush1.msra.mxu0 0.0
    %661 = vmatprep.subr.mxu0 0.0
    %662 = vmatpush1.msra.mxu0 0.0
    %663 = vmatprep.mubr.f32.mxu0 0.0
    %664 = vmatmul.mubr.f32.gmra.mrb[0].mxu0 %v597
    %v665 = vpop.f32.mrb[0].mxu0
    %v666 = vadd.f32 0.0, %v665
    %v667 = vpop.f32.mrb[0].mxu0
    %668 = vdwg.mxu0
    %v669 = vmul.f32 %v508, 0.5
    %v670 = vadd.f32 %v669, %v666
    %v671 = vmul.f32 %v515, 0.5
    %v672 = vadd.f32 %v671, %v670
    %v673 = vsub.f32 %v672, 0.1
    %vm674 = vcmp.gt.f32.partialorder %v673, 0.0
    %v675 = vsel %vm674, 1, 0
    %v676 = vcvt.s32.f32 %v675
    %v678 = vsel %vm112, %v676, 0
    %680 = vmatprep.subr.mxu0 0.0
    %681 = vmatpush1.msra.mxu0 %v23
    %682 = vmatprep.subr.mxu0 0.0
    %683 = vmatpush1.msra.mxu0 %v24
    %684 = vmatprep.subr.mxu0 0.0
    %685 = vmatpush1.msra.mxu0 %v25
    %686 = vmatprep.subr.mxu0 0.0
    %687 = vmatpush1.msra.mxu0 %v26
    %688 = vmatprep.subr.mxu0 0.0
    %689 = vmatpush1.msra.mxu0 0.0
    %690 = vmatprep.subr.mxu0 0.0
    %691 = vmatpush1.msra.mxu0 0.0
    %692 = vmatprep.subr.mxu0 0.0
    %693 = vmatpush1.msra.mxu0 0.0
    %694 = vmatprep.subr.mxu0 0.0
    %695 = vmatpush1.msra.mxu0 0.0
    %696 = vmatprep.subr.mxu0 0.0
    %697 = vmatpush1.msra.mxu0 0.0
    %698 = vmatprep.subr.mxu0 0.0
    %699 = vmatpush1.msra.mxu0 0.0
    %700 = vmatprep.subr.mxu0 0.0
    %701 = vmatpush1.msra.mxu0 0.0
    %702 = vmatprep.subr.mxu0 0.0
    %703 = vmatpush1.msra.mxu0 0.0
    %704 = vmatprep.subr.mxu0 0.0
    %705 = vmatpush1.msra.mxu0 0.0
    %706 = vmatprep.subr.mxu0 0.0
    %707 = vmatpush1.msra.mxu0 0.0
    %708 = vmatprep.subr.mxu0 0.0
    %709 = vmatpush1.msra.mxu0 0.0
    %710 = vmatprep.subr.mxu0 0.0
    %711 = vmatpush1.msra.mxu0 0.0
    %712 = vmatprep.subr.mxu0 0.0
    %713 = vmatpush1.msra.mxu0 0.0
    %714 = vmatprep.subr.mxu0 0.0
    %715 = vmatpush1.msra.mxu0 0.0
    %716 = vmatprep.subr.mxu0 0.0
    %717 = vmatpush1.msra.mxu0 0.0
    %718 = vmatprep.subr.mxu0 0.0
    %719 = vmatpush1.msra.mxu0 0.0
    %720 = vmatprep.subr.mxu0 0.0
    %721 = vmatpush1.msra.mxu0 0.0
    %722 = vmatprep.subr.mxu0 0.0
    %723 = vmatpush1.msra.mxu0 0.0
    %724 = vmatprep.subr.mxu0 0.0
    %725 = vmatpush1.msra.mxu0 0.0
    %726 = vmatprep.subr.mxu0 0.0
    %727 = vmatpush1.msra.mxu0 0.0
    %728 = vmatprep.subr.mxu0 0.0
    %729 = vmatpush1.msra.mxu0 0.0
    %730 = vmatprep.subr.mxu0 0.0
    %731 = vmatpush1.msra.mxu0 0.0
    %732 = vmatprep.subr.mxu0 0.0
    %733 = vmatpush1.msra.mxu0 0.0
    %734 = vmatprep.subr.mxu0 0.0
    %735 = vmatpush1.msra.mxu0 0.0
    %736 = vmatprep.subr.mxu0 0.0
    %737 = vmatpush1.msra.mxu0 0.0
    %738 = vmatprep.subr.mxu0 0.0
    %739 = vmatpush1.msra.mxu0 0.0
    %740 = vmatprep.subr.mxu0 0.0
    %741 = vmatpush1.msra.mxu0 0.0
    %742 = vmatprep.subr.mxu0 0.0
    %743 = vmatpush1.msra.mxu0 0.0
    %744 = vmatprep.mubr.f32.mxu0 0.0
    %745 = vmatmul.mubr.f32.gmra.mrb[0].mxu0 %v678
    %v746 = vpop.f32.mrb[0].mxu0
    %v747 = vadd.f32 0.0, %v746
    %v748 = vpop.f32.mrb[0].mxu0
    %749 = vdwg.mxu0
    %v750 = vadd.f32 %v589, %v747
    %v751 = vtanh.pop %v750
    %vm752 = vcmask 9216
    %753 = vst.msk [vmem:[#allocation2] sm:$0x3] %vm752, %v751
    // Predicated region
    $region18: #{tpu_custom_call.1} parent=1 // pred_check
      _
    $region19: #{tpu_custom_call.1} parent=1 // pred_check_branch
      %755 = sbr.rel (0) target = $region21
    $region20: #{tpu_custom_call.1} parent=1 // pred_region
      %s757 = ssub.s32 32, 32
      %758 = vsyncadd [#allocation3], %s757
      %s760 = sshll.u32 [#allocation2], 4
      %s761 = int_to_ptr.vmem [resolvable:$true] %s760
      %763 = dma.vmem_to_hbm [thread:$0]  %s761, 32, %s4, [#allocation3]
    $region21: #{tpu_custom_call.1} parent=1 // pred_fallthru
      _
    // Predicated region
    $region22: #{tpu_custom_call.1} parent=1 // pred_check
      _
    $region23: #{tpu_custom_call.1} parent=1 // pred_check_branch
      %765 = sbr.rel (0) target = $region25
    $region24: #{tpu_custom_call.1} parent=1 // pred_region
      %766 = dma.done [#allocation3], 32
    $region25: #{tpu_custom_call.1} parent=1 // pred_fallthru
      _
    %767 = vsyncpa [#allocation3], 1

</llo_original>
